<compile_context>
chip_gen: v5e
topology: v5e:2x2
jax: 0.10.0
libtpu: 0.0.40
codegen_flags: <defaults>
</compile_context>

<pallas_src>
import functools

import jax
import jax.numpy as jnp
from jax import lax
from jax.experimental import pallas as pl
from jax.experimental.pallas import tpu as pltpu


def _round_up(x, m):
    return (x + m - 1) // m * m


def focal_loss_kernel(logits_ref, targets_ref, out_ref, *, gamma, total_n, block_n):
    i = pl.program_id(0)

    # Upcast in VMEM (ingress stays in the source dtype, e.g. bf16).
    logits = logits_ref[...].astype(jnp.float32)            # (bn, C)
    tgt = targets_ref[...]                                   # (bn, 1) int32
    bn, c = logits.shape

    # Numerically-stable log-sum-exp along classes (lane axis).
    m = jnp.max(logits, axis=-1, keepdims=True)
    shifted = logits - m
    exp_shifted = jnp.exp(shifted)
    sum_exp = jnp.sum(exp_shifted, axis=-1, keepdims=True)
    lse = jnp.log(sum_exp)                                   # (bn, 1)

    # Target-class gather via select-then-reduce (no f32 one-hot materialized).
    classes = lax.broadcasted_iota(jnp.int32, (bn, c), 1)
    tgt_shifted = jnp.sum(jnp.where(classes == tgt, shifted, 0.0),
                          axis=-1, keepdims=True)            # (bn, 1)

    # Fused CE and pt = exp(-ce) (EUP exp on a (bn, 1) column — cheap).
    ce = lse - tgt_shifted                                   # (bn, 1)
    pt = jnp.exp(tgt_shifted - lse)                          # (bn, 1)

    one_minus_pt = 1.0 - pt
    g = float(gamma)
    if g.is_integer():
        focal_w = lax.integer_pow(one_minus_pt, int(g))      # gamma=2 -> one VPU mul
    else:
        # clamp: pt can round a ulp above 1, pow(neg, frac) would be NaN
        focal_w = jnp.maximum(one_minus_pt, 0.0) ** g
    focal = focal_w * ce                                      # (bn, 1)

    # Only the tiny focal column needs padded-row masking: all reductions are
    # row-local, so garbage in padded rows can never contaminate valid rows.
    row = i * block_n + lax.broadcasted_iota(jnp.int32, (bn, 1), 0)
    focal = jnp.where(row < total_n, focal, 0.0)
    block_sum = jnp.sum(focal)

    # Lane-dense (1, 8, 128) partial tile, single unmasked broadcast store.
    # The JAX epilogue only reads element [:, 0, 0].
    out_ref[...] = jnp.broadcast_to(block_sum, out_ref.shape).astype(jnp.float32)


def focal_loss(logits, targets, gamma=2.0, block_rows=None,
               target_tile_bytes=4 * 1024 * 1024):
    n, c = logits.shape
    itemsize = jnp.dtype(logits.dtype).itemsize
    targets2d = targets.reshape(n, 1).astype(jnp.int32)

    # Sublane alignment depends on packing: f32 -> 8, bf16 -> 16, int8/fp8 -> 32.
    align = 8 * max(1, 4 // itemsize)

    # Physical VMEM per core (v5e/v6e: 128 MiB, v7x: 64 MiB).
    try:
        vmem_cap = int(pltpu.get_tpu_info().vmem_capacity_bytes)
    except Exception:
        vmem_cap = 64 * 1024 * 1024  # conservative (v7x) fallback

    # Per-row VMEM cost: 2x double-buffered ingress at source dtype,
    # ~4 f32 (bn, C) intermediates inside the kernel, and the lane-padded
    # (bn, 128) int32 targets tile (x2 buffers).
    per_row = 2 * c * itemsize + 4 * c * 4 + 2 * 128 * 4
    vmem_budget = int(vmem_cap * 0.6)                 # headroom for compiler scratch
    max_bn = max(align, (vmem_budget // per_row) // align * align)

    # Byte-targeted ingress tile (amortizes the ~0.35 us per-grid-step overhead).
    bn = max(align, (target_tile_bytes // max(1, c * itemsize)) // align * align)
    if block_rows is not None:
        bn = max(align, _round_up(block_rows, align))
    bn = min(bn, max_bn, _round_up(n, align))
    grid = pl.cdiv(n, bn)

    vmem_limit = max(32 * 1024 * 1024,
                     min(int(vmem_cap * 0.75), 96 * 1024 * 1024))

    kernel = functools.partial(focal_loss_kernel, gamma=gamma, total_n=n, block_n=bn)
    partials = pl.pallas_call(
        kernel,
        grid=(grid,),
        out_shape=jax.ShapeDtypeStruct((grid, 8, 128), jnp.float32),
        in_specs=[
            pl.BlockSpec((bn, c), lambda i: (i, 0)),          # logits (source dtype)
            pl.BlockSpec((bn, 1), lambda i: (i, 0)),          # targets (int32)
        ],
        out_specs=pl.BlockSpec((1, 8, 128), lambda i: (i, 0, 0)),
        compiler_params=pltpu.CompilerParams(
            dimension_semantics=("parallel",),
            vmem_limit_bytes=vmem_limit,
        ),
        cost_estimate=pl.CostEstimate(
            flops=8 * n * c,
            transcendentals=n * c + 2 * n,
            bytes_accessed=n * c * itemsize + n * 4 + grid * 8 * 128 * 4,
        ),
    )(logits, targets2d)

    # Tiny final reduction + mean in plain JAX (only [:, 0, 0] carries data).
    return jnp.sum(partials[:, 0, 0]) / jnp.float32(n)


def focal_loss_ref(logits, targets, gamma=2.0):
    # pure-JAX reference of F.cross_entropy(reduction='none') + focal weighting
    log_probs = jax.nn.log_softmax(logits.astype(jnp.float32), axis=-1)
    ce = -jnp.take_along_axis(log_probs, targets[:, None], axis=-1)[:, 0]
    pt = jnp.exp(-ce)
    return jnp.mean((1.0 - pt) ** gamma * ce)


if __name__ == "__main__":
    key = jax.random.PRNGKey(0)
    k1, k2, k3, k4, k5, k6 = jax.random.split(key, 6)

    # Case 1: f32 logits, batch of 8 samples, 32 classes (single block, default tiling).
    N1, C1 = 8, 32
    logits1 = jax.random.normal(k1, (N1, C1), dtype=jnp.float32)
    targets1 = jax.random.randint(k2, (N1,), 0, C1, dtype=jnp.int32)
    out1 = jax.block_until_ready(focal_loss(logits1, targets1, gamma=2.0))
    ref1 = focal_loss_ref(logits1, targets1, gamma=2.0)
    assert jnp.allclose(out1, ref1, atol=1e-5, rtol=1e-5), (out1, ref1)

    # Case 2: bf16 logits (no wrapper upcast), multi-block grid with a
    # padded + masked final block (N=24 rows, 16-row tiles -> grid=2).
    N2, C2 = 24, 48
    logits2 = jax.random.normal(k3, (N2, C2), dtype=jnp.float32).astype(jnp.bfloat16)
    targets2 = jax.random.randint(k4, (N2,), 0, C2, dtype=jnp.int32)
    out2 = jax.block_until_ready(focal_loss(logits2, targets2, gamma=2.0, block_rows=16))
    ref2 = focal_loss_ref(logits2, targets2, gamma=2.0)
    assert jnp.allclose(out2, ref2, atol=1e-5, rtol=1e-5), (out2, ref2)

    # Case 3: non-integer gamma (exercises the clamped pow path).
    N3, C3 = 16, 32
    logits3 = jax.random.normal(k5, (N3, C3), dtype=jnp.float32)
    targets3 = jax.random.randint(k6, (N3,), 0, C3, dtype=jnp.int32)
    out3 = jax.block_until_ready(focal_loss(logits3, targets3, gamma=1.5))
    ref3 = focal_loss_ref(logits3, targets3, gamma=1.5)
    assert jnp.allclose(out3, ref3, atol=1e-5, rtol=1e-5), (out3, ref3)

    print("KERNEL_OK")
</pallas_src>

<mosaic_0001>
module attributes {stable_mosaic.version = 11 : i64} {
  func.func @focal_loss_kernel(%arg0: i32, %arg1: memref<8x32xf32, #tpu.memory_space<vmem>>, %arg2: memref<8x1xi32, #tpu.memory_space<vmem>>, %arg3: memref<1x8x128xf32, #tpu.memory_space<vmem>>) attributes {dimension_semantics = [#tpu.dimension_semantics<parallel>], iteration_bounds = array<i64: 1>, scalar_prefetch = 0 : i64, scratch_operands = 0 : i64, tpu.core_type = #tpu.core_type<tc>, window_params = [{transform_indices = @transform_0, window_bounds = array<i64: 8, 32>}, {transform_indices = @transform_1, window_bounds = array<i64: 8, 1>}, {transform_indices = @transform_2, window_bounds = array<i64: 1, 8, 128>}]} {
    %c0 = arith.constant 0 : index
    %c0_0 = arith.constant 0 : index
    %0 = vector.load %arg1[%c0, %c0_0] : memref<8x32xf32, #tpu.memory_space<vmem>>, vector<8x32xf32>
    %c0_1 = arith.constant 0 : index
    %c0_2 = arith.constant 0 : index
    %1 = vector.load %arg2[%c0_1, %c0_2] : memref<8x1xi32, #tpu.memory_space<vmem>>, vector<8x1xi32>
    %cst = arith.constant dense<0xFF800000> : vector<8xf32>
    %2 = vector.multi_reduction <maximumf>, %0, %cst [1] : vector<8x32xf32> to vector<8xf32>
    %3 = vector.shape_cast %2 : vector<8xf32> to vector<8x1xf32>
    %4 = vector.broadcast %3 : vector<8x1xf32> to vector<8x32xf32>
    %5 = arith.subf %0, %4 : vector<8x32xf32>
    %6 = math.exp %5 : vector<8x32xf32>
    %cst_3 = arith.constant dense<0.000000e+00> : vector<8xf32>
    %7 = vector.multi_reduction <add>, %6, %cst_3 [1] : vector<8x32xf32> to vector<8xf32>
    %8 = vector.shape_cast %7 : vector<8xf32> to vector<8x1xf32>
    %9 = math.log %8 : vector<8x1xf32>
    %10 = tpu.iota {dimensions = array<i32: 1>} : vector<8x32xi32>
    %11 = vector.broadcast %1 : vector<8x1xi32> to vector<8x32xi32>
    %12 = arith.cmpi eq, %10, %11 : vector<8x32xi32>
    %cst_4 = arith.constant 0.000000e+00 : f32
    %13 = vector.broadcast %cst_4 : f32 to vector<8x32xf32>
    %14 = arith.select %12, %5, %13 : vector<8x32xi1>, vector<8x32xf32>
    %cst_5 = arith.constant dense<0.000000e+00> : vector<8xf32>
    %15 = vector.multi_reduction <add>, %14, %cst_5 [1] : vector<8x32xf32> to vector<8xf32>
    %16 = vector.shape_cast %15 : vector<8xf32> to vector<8x1xf32>
    %17 = arith.subf %9, %16 : vector<8x1xf32>
    %18 = arith.subf %16, %9 : vector<8x1xf32>
    %19 = math.exp %18 : vector<8x1xf32>
    %cst_6 = arith.constant 1.000000e+00 : f32
    %20 = vector.broadcast %cst_6 : f32 to vector<8x1xf32>
    %21 = arith.subf %20, %19 : vector<8x1xf32>
    %22 = arith.mulf %21, %21 : vector<8x1xf32>
    %23 = arith.mulf %22, %17 : vector<8x1xf32>
    %c8_i32 = arith.constant 8 : i32
    %24 = arith.muli %arg0, %c8_i32 : i32
    %25 = tpu.iota {dimensions = array<i32: 0>} : vector<8x1xi32>
    %26 = vector.broadcast %24 : i32 to vector<8x1xi32>
    %27 = arith.addi %26, %25 : vector<8x1xi32>
    %c8_i32_7 = arith.constant 8 : i32
    %28 = vector.broadcast %c8_i32_7 : i32 to vector<8x1xi32>
    %29 = arith.cmpi slt, %27, %28 : vector<8x1xi32>
    %cst_8 = arith.constant 0.000000e+00 : f32
    %30 = vector.broadcast %cst_8 : f32 to vector<8x1xf32>
    %31 = arith.select %29, %23, %30 : vector<8x1xi1>, vector<8x1xf32>
    %32 = vector.shape_cast %31 : vector<8x1xf32> to vector<1x8x1xf32>
    %cst_9 = arith.constant dense<0.000000e+00> : vector<1xf32>
    %33 = vector.multi_reduction <add>, %32, %cst_9 [1, 2] : vector<1x8x1xf32> to vector<1xf32>
    %34 = vector.shape_cast %33 : vector<1xf32> to vector<1x1x1xf32>
    %35 = vector.extract %34[0, 0, 0] : f32 from vector<1x1x1xf32>
    %36 = vector.broadcast %35 : f32 to vector<1x8x128xf32>
    %c0_10 = arith.constant 0 : index
    %c0_11 = arith.constant 0 : index
    %c0_12 = arith.constant 0 : index
    %37 = vector.load %arg3[%c0_10, %c0_11, %c0_12] : memref<1x8x128xf32, #tpu.memory_space<vmem>>, vector<1x8x128xf32>
    tpu.vector_store %arg3[%c0_10, %c0_11, %c0_12], %36 {strides = array<i32>} : memref<1x8x128xf32, #tpu.memory_space<vmem>>, vector<1x8x128xf32>,
    return
  }
  func.func @transform_0(%arg0: i32) -> (i32, i32) {
    %c0_i32 = arith.constant 0 : i32
    %c0_i32_0 = arith.constant 0 : i32
    return %arg0, %c0_i32 : i32, i32
  }
  func.func @transform_1(%arg0: i32) -> (i32, i32) {
    %c0_i32 = arith.constant 0 : i32
    %c0_i32_0 = arith.constant 0 : i32
    return %arg0, %c0_i32 : i32, i32
  }
  func.func @transform_2(%arg0: i32) -> (i32, i32, i32) {
    %c0_i32 = arith.constant 0 : i32
    %c0_i32_0 = arith.constant 0 : i32
    %c0_i32_1 = arith.constant 0 : i32
    return %arg0, %c0_i32, %c0_i32_0 : i32, i32, i32
  }
}

</mosaic_0001>

<llo_original>
// kernel: tpu_custom_call.1
$region0: #{tpu_custom_call.1}
  #allocation0 [shape = 'u32[]', space=smem, size = 0x4, offset = 0x4, fixed_abs, tag = 'smem constant byte address 0x4 - core index']
  #allocation1 [shape = 'u32[72,128]{1,0:T(1,128)}', space=vmem, size = 0x9000, scoped, tag = 'internal scratch']
  %s0 = inlined_call_operand.vmem [shape: f32[8,32], index: 0, kind: input, shape index: {}]
  %s1 = inlined_call_operand.vmem [shape: s32[8,1], index: 1, kind: input, shape index: {}]
  %s2 = inlined_call_operand.hbm [shape: f32[1,8,128], index: 2, kind: output, shape index: {}]
  %s3 = sld [smem:[#allocation0]]
  $region18: #{tpu_custom_call.1} parent=0
    _
  %s5 = ssub.s32 1, %s3
  %s6 = scalar_select 0, %s5, %s3
  $region1: #{tpu_custom_call.1} parent=0
    #allocation2 [shape = 'u8[4096]{0}', space=vmem, size = 0x1000, scoped, tag = 'output window, operand 0, single buffered']
    #allocation3 [shape = 's32[1]{0}', space=sflag, size = 0x4, scoped, tag = 'scoped memory for tpu_custom_call.1']
    %7 = vsyncpa [#allocation3], 0
    // Predicated region
    $region2: #{tpu_custom_call.1} parent=1 // pred_check
      _
    $region3: #{tpu_custom_call.1} parent=1 // pred_check_branch
      %9 = sbr.rel (0) target = $region5
    $region4: #{tpu_custom_call.1} parent=1 // pred_region
      _
    $region5: #{tpu_custom_call.1} parent=1 // pred_fallthru
      _
    // Predicated region
    $region6: #{tpu_custom_call.1} parent=1 // pred_check
      _
    $region7: #{tpu_custom_call.1} parent=1 // pred_check_branch
      %11 = sbr.rel (0) target = $region9
    $region8: #{tpu_custom_call.1} parent=1 // pred_region
      _
    $region9: #{tpu_custom_call.1} parent=1 // pred_fallthru
      _
    %v12 = vld [vmem:[%s0] sm:$0xff]
    %v13 = vld [vmem:[%s1] sm:$0xff]
    %vm14 = vcmask 261120
    %v15 = vsel %vm14, %v12, -inf
    %16 = vmax.xlane.f32.xlu0 %v15
    %v17 = vpop.xlane.xlu0 %16
    %v18 = vsub.f32 %v12, %v17
    %v19 = vmul.f32 %v18, 1.442695
    %v20 = vpow.pop %v19
    %v21 = vsel %vm14, %v20, 0.0
    %22 = vadd.xlane.f32.xlu0 %v21
    %v23 = vpop.xlane.xlu0 %22
    %v24 = vlog2.pop %v23
    %v25 = vmul.f32 %v24, 0.6931472
    %v26 = vlaneseq
    %v27 = vand.u32 %v26, 127
    %28 = vset.pattern.permute.xlu0 0
    %29 = vperm.xlu0 %28, %v13
    %v30 = vpop.permute.xlu0 %29
    %vm31 = vcmp.eq.s32.totalorder %v27, %v30
    %v32 = vsel %vm31, %v18, 0.0
    %v33 = vsel %vm14, %v32, 0.0
    %34 = vadd.xlane.f32.xlu0 %v33
    %v35 = vpop.xlane.xlu0 %34
    %v36 = vsub.f32 %v25, %v35
    %v37 = vsub.f32 %v35, %v25
    %v38 = vmul.f32 %v37, 1.442695
    %v39 = vpow.pop %v38
    %v40 = vsub.f32 1.0, %v39
    %v41 = vmul.f32 %v40, %v40
    %v42 = vmul.f32 %v41, %v36
    %s43 = smul.u32 0, 8
    %v44 = vlaneseq
    %v45 = vshrl.u32 %v44, 7
    %v46 = vstv %s43
    %v47 = vadd.s32 %v46, %v45
    %vm48 = vcmp.lt.s32.totalorder %v47, 8
    %v49 = vsel %vm48, %v42, 0.0
    %vm50 = vcmask 7168
    %v51 = vsel %vm50, %v49, 0.0
    %52 = vadd.xlane.f32.xlu0 %v51
    %v53 = vpop.xlane.xlu0 %52
    %v54 = vrot.slane %v53, 4
    %v55 = vadd.f32 %v53, %v54
    %v56 = vrot.slane %v55, 2
    %v57 = vadd.f32 %v55, %v56
    %v58 = vrot.slane %v57, 1
    %v59 = vadd.f32 %v57, %v58
    %s60 = vtos %v59
    %v61 = vstv %s60
    %62 = vst [vmem:[#allocation2] sm:$0xff] %v61
    // Predicated region
    $region10: #{tpu_custom_call.1} parent=1 // pred_check
      _
    $region11: #{tpu_custom_call.1} parent=1 // pred_check_branch
      %64 = sbr.rel (0) target = $region13
    $region12: #{tpu_custom_call.1} parent=1 // pred_region
      %66 = vsyncadd [#allocation3], 0
      %s68 = sshll.u32 [#allocation2], 4
      %s69 = int_to_ptr.vmem [resolvable:$true] %s68
      %s70 = sshll.u32 %s2, 4
      %s71 = int_to_ptr.hbm [resolvable:$true] %s70
      %73 = dma.vmem_to_hbm [thread:$0]  %s69, 128, %s71, [#allocation3]
    $region13: #{tpu_custom_call.1} parent=1 // pred_fallthru
      _
    // Predicated region
    $region14: #{tpu_custom_call.1} parent=1 // pred_check
      _
    $region15: #{tpu_custom_call.1} parent=1 // pred_check_branch
      %75 = sbr.rel (0) target = $region17
    $region16: #{tpu_custom_call.1} parent=1 // pred_region
      %77 = dma.done [#allocation3], 128
    $region17: #{tpu_custom_call.1} parent=1 // pred_fallthru
      _
    %78 = vsyncpa [#allocation3], 1

</llo_original>
